<compile_context>
chip_gen: v7x
topology: tpu7x:2x2x1
jax: 0.10.0
libtpu: 0.0.40
codegen_flags: <defaults>
</compile_context>

<pallas_src>
import functools
import math

import jax
import jax.numpy as jnp
from jax.experimental import pallas as pl
from jax.experimental.pallas import tpu as pltpu

_LANE = 128
_SUBLANE = 8
# sigmoid(z) > 0.7  <=>  z > log(0.7 / 0.3)
_EVAL_LOGIT_THRESHOLD = math.log(0.7 / 0.3)


def _round_up(n: int, m: int) -> int:
    return ((n + m - 1) // m) * m


def _pad2d(a, shape):
    pr, pc = shape[0] - a.shape[0], shape[1] - a.shape[1]
    if pr == 0 and pc == 0:
        return a
    return jnp.pad(a, ((0, pr), (0, pc)))


def _pick_batch_tile(batch: int) -> int:
    # Largest MXU-aligned tile that still leaves >= 2 grid steps, so
    #  (a) each matmul's M dim fills MXU rows and the ~0.35us/step overhead is
    #      amortized, and
    #  (b) the "parallel" grid axis can be sharded across v7x's 2 TensorCores
    #      while x/out DMAs pipeline against compute.
    for tile in (1024, 512, 256, 128, 64, 32, 16, 8):
        if batch >= 2 * tile:
            return tile
    return _SUBLANE  # tiny batch: one padded tile; launch-overhead bound anyway


def _mlp_kernel(x_ref, w1_ref, b1_ref, w2_ref, b2_ref, w3_ref, b3_ref, o_ref,
                *, training: bool):
    # Three MXU matmuls (bf16 in, f32 accumulate); bias/relu/sigmoid on VPU/EUP in f32.
    x = x_ref[...].astype(jnp.bfloat16)                               # cast in-kernel

    h1 = jnp.dot(x, w1_ref[...], preferred_element_type=jnp.float32) + b1_ref[...]
    h1 = jnp.maximum(h1, 0.0)

    h2 = jnp.dot(h1.astype(jnp.bfloat16), w2_ref[...],
                 preferred_element_type=jnp.float32) + b2_ref[...]
    h2 = jnp.maximum(h2, 0.0)

    logits = jnp.dot(h2.astype(jnp.bfloat16), w3_ref[...],
                     preferred_element_type=jnp.float32) + b3_ref[...]

    if training:  # static Python flag -> two specialized kernels
        y = jax.nn.sigmoid(logits)
    else:
        # eval: sigmoid(z) > 0.7  <=>  z > log(0.7/0.3); skips the EUP sigmoid.
        y = (logits > _EVAL_LOGIT_THRESHOLD).astype(jnp.float32)

    o_ref[...] = y.astype(o_ref.dtype)


def prepare_params(params):
    """Pad feature dims to the 128-lane width and cast weights to bf16 — done once."""
    in_dim, hidden = params["w1"].shape
    out_dim = params["w3"].shape[1]
    hidden_p = _round_up(hidden, _LANE)
    out_p = _round_up(out_dim, _LANE)
    return {
        "w1": _pad2d(params["w1"].astype(jnp.bfloat16), (in_dim, hidden_p)),
        "b1": _pad2d(params["b1"].astype(jnp.float32), (1, hidden_p)),
        "w2": _pad2d(params["w2"].astype(jnp.bfloat16), (hidden_p, hidden_p)),
        "b2": _pad2d(params["b2"].astype(jnp.float32), (1, hidden_p)),
        "w3": _pad2d(params["w3"].astype(jnp.bfloat16), (hidden_p, out_p)),
        "b3": _pad2d(params["b3"].astype(jnp.float32), (1, out_p)),
    }


@functools.partial(jax.jit,
                   static_argnames=("input_size", "output_size", "training", "batch_tile"))
def simple_mlp_forward(x, prepped, *, input_size: int, output_size: int,
                       training: bool = True, batch_tile: int | None = None):
    """SimpleMLP forward as one fused Pallas TPU kernel.

    x: any shape whose elements flatten to rows of `input_size` (mirrors
       x.view(-1, input_size)). prepped: output of prepare_params (weights in
       [in, out] bf16 layout, biases [1, out] f32, feature dims lane-padded).
    """
    in_dim = input_size
    w1, b1 = prepped["w1"], prepped["b1"]
    w2, b2 = prepped["w2"], prepped["b2"]
    w3, b3 = prepped["w3"], prepped["b3"]
    hidden_p = w1.shape[1]
    out_p = w3.shape[1]

    # ---- x: flatten to rows, keep f32 (cast to bf16 inside the kernel) ----
    x2d = x.reshape(-1, in_dim)
    B = x2d.shape[0]

    # ---- batch tiling: MXU-aligned tile, grid >= 2 when the batch allows ----
    tb = _round_up(batch_tile, _SUBLANE) if batch_tile else _pick_batch_tile(B)
    b_pad = _round_up(B, tb)
    if b_pad != B:
        x2d = jnp.pad(x2d, ((0, b_pad - B), (0, 0)))
    grid = (b_pad // tb,)

    kernel = functools.partial(_mlp_kernel, training=training)

    # Weights/biases never change across the batch grid: place them whole in VMEM
    # (single copy, no per-step DMA, no double-buffer allocation).
    vmem_const = pl.BlockSpec(memory_space=pltpu.MemorySpace.VMEM)
    in_specs = [
        pl.BlockSpec((tb, in_dim), lambda i: (i, 0)),   # x: tiled over batch
        vmem_const,                                      # w1
        vmem_const,                                      # b1
        vmem_const,                                      # w2
        vmem_const,                                      # b2
        vmem_const,                                      # w3
        vmem_const,                                      # b3
    ]
    out_spec = pl.BlockSpec((tb, out_p), lambda i: (i, 0))

    flops = 2 * b_pad * (in_dim * hidden_p + hidden_p * hidden_p + hidden_p * out_p)
    bytes_accessed = (x2d.size * x2d.dtype.itemsize
                      + (w1.size + w2.size + w3.size) * 2
                      + (b1.size + b2.size + b3.size) * 4
                      + b_pad * out_p * 4)
    cost = pl.CostEstimate(flops=flops,
                           transcendentals=(b_pad * out_p if training else 0),
                           bytes_accessed=bytes_accessed)

    out = pl.pallas_call(
        kernel,
        out_shape=jax.ShapeDtypeStruct((b_pad, out_p), jnp.float32),
        grid_spec=pltpu.PrefetchScalarGridSpec(
            num_scalar_prefetch=0,
            grid=grid,
            in_specs=in_specs,
            out_specs=out_spec,
        ),
        compiler_params=pltpu.CompilerParams(
            dimension_semantics=("parallel",),     # batch tiles are independent
            vmem_limit_bytes=64 * 1024 * 1024,     # within v7x's 64 MiB physical VMEM
        ),
        cost_estimate=cost,
    )(x2d, w1, b1, w2, b2, w3, b3)

    # Strip batch / lane padding outside the kernel (keeps in-kernel stores dense).
    return out[:B, :output_size]


def init_params(key, input_size, hidden_size, output_size):
    """nn.Linear-style U(-1/sqrt(fan_in), 1/sqrt(fan_in)); weights pre-transposed to [in, out]."""
    ks = jax.random.split(key, 6)

    def linear(kw, kb, fan_in, fan_out):
        bound = 1.0 / math.sqrt(fan_in)
        w = jax.random.uniform(kw, (fan_in, fan_out), jnp.float32, -bound, bound)
        b = jax.random.uniform(kb, (1, fan_out), jnp.float32, -bound, bound)
        return w, b

    w1, b1 = linear(ks[0], ks[1], input_size, hidden_size)
    w2, b2 = linear(ks[2], ks[3], hidden_size, hidden_size)
    w3, b3 = linear(ks[4], ks[5], hidden_size, output_size)
    return {"w1": w1, "b1": b1, "w2": w2, "b2": b2, "w3": w3, "b3": b3}


def reference_forward(x, params, *, input_size, training):
    """Pure-JAX reference with the same precision scheme (bf16 matmul inputs, f32 accumulation)."""
    x2d = x.reshape(-1, input_size)

    def dot(a, w):
        return jnp.dot(a.astype(jnp.bfloat16), w.astype(jnp.bfloat16),
                       preferred_element_type=jnp.float32)

    h1 = jnp.maximum(dot(x2d, params["w1"]) + params["b1"], 0.0)
    h2 = jnp.maximum(dot(h1, params["w2"]) + params["b2"], 0.0)
    y = jax.nn.sigmoid(dot(h2, params["w3"]) + params["b3"])
    if not training:
        y = (y > 0.7).astype(jnp.float32)
    return y


if __name__ == "__main__":
    # NOTE: at these demo sizes the kernel is launch/DMA-overhead bound; the Pallas
    # path pays off for large-batch inference where the grid has many 128+-row steps.
    input_size, hidden_size, output_size = 32, 32, 16

    key = jax.random.PRNGKey(0)
    k_params, k_x, k_x2 = jax.random.split(key, 3)
    params = init_params(k_params, input_size, hidden_size, output_size)
    prepped = prepare_params(params)   # pad + cast once (weight-layout prep)

    # batch chosen so the auto-picked tile is 32 rows and the grid has 2 "parallel"
    # steps (both v7x TensorCores busy) while staying small.
    x = jax.random.normal(k_x, (64, input_size), jnp.float32)

    # training-mode path (sigmoid output, no threshold)
    y_train = jax.block_until_ready(
        simple_mlp_forward(x, prepped, input_size=input_size,
                           output_size=output_size, training=True))
    ref_train = reference_forward(x, params, input_size=input_size, training=True)
    assert y_train.shape == ref_train.shape
    assert jnp.allclose(y_train, ref_train, atol=1e-5, rtol=1e-5)

    # eval-mode path (module.eval(): output thresholded at 0.7). The kernel thresholds
    # the logits directly; allow disagreement only in float noise of the 0.7 boundary.
    y_eval = jax.block_until_ready(
        simple_mlp_forward(x, prepped, input_size=input_size,
                           output_size=output_size, training=False))
    ref_eval = reference_forward(x, params, input_size=input_size, training=False)
    agree_or_boundary = (y_eval == ref_eval) | (jnp.abs(ref_train - 0.7) < 1e-4)
    assert bool(jnp.all(agree_or_boundary))

    # multi-dim input exercising the view(-1, input_size) reshape and batch-pad path
    # (6 rows -> padded to 8, one 8-row tile).
    x_small = jax.random.normal(k_x2, (6, 4, 8), jnp.float32)  # 192 elems -> 6 rows of 32
    y_small = jax.block_until_ready(
        simple_mlp_forward(x_small, prepped, input_size=input_size,
                           output_size=output_size, training=True))
    ref_small = reference_forward(x_small, params, input_size=input_size, training=True)
    assert y_small.shape == ref_small.shape
    assert jnp.allclose(y_small, ref_small, atol=1e-5, rtol=1e-5)

    print("KERNEL_OK")
</pallas_src>

<mosaic_0001>
module attributes {stable_mosaic.version = 11 : i64} {
  func.func @_mlp_kernel(%arg0: i32, %arg1: memref<32x32xf32, #tpu.memory_space<vmem>>, %arg2: memref<32x128xbf16, #tpu.memory_space<vmem>>, %arg3: memref<1x128xf32, #tpu.memory_space<vmem>>, %arg4: memref<128x128xbf16, #tpu.memory_space<vmem>>, %arg5: memref<1x128xf32, #tpu.memory_space<vmem>>, %arg6: memref<128x128xbf16, #tpu.memory_space<vmem>>, %arg7: memref<1x128xf32, #tpu.memory_space<vmem>>, %arg8: memref<32x128xf32, #tpu.memory_space<vmem>>) attributes {dimension_semantics = [#tpu.dimension_semantics<parallel>], iteration_bounds = array<i64: 2>, scalar_prefetch = 0 : i64, scratch_operands = 0 : i64, tpu.core_type = #tpu.core_type<tc>, window_params = [{transform_indices = @transform_0, window_bounds = array<i64: 32, 32>}, {pipeline_mode = #tpu.pipeline_mode<synchronous>, transform_indices = @transform_1, window_bounds = array<i64: 32, 128>}, {pipeline_mode = #tpu.pipeline_mode<synchronous>, transform_indices = @transform_2, window_bounds = array<i64: 1, 128>}, {pipeline_mode = #tpu.pipeline_mode<synchronous>, transform_indices = @transform_3, window_bounds = array<i64: 128, 128>}, {pipeline_mode = #tpu.pipeline_mode<synchronous>, transform_indices = @transform_4, window_bounds = array<i64: 1, 128>}, {pipeline_mode = #tpu.pipeline_mode<synchronous>, transform_indices = @transform_5, window_bounds = array<i64: 128, 128>}, {pipeline_mode = #tpu.pipeline_mode<synchronous>, transform_indices = @transform_6, window_bounds = array<i64: 1, 128>}, {transform_indices = @transform_7, window_bounds = array<i64: 32, 128>}]} {
    %c0 = arith.constant 0 : index
    %c0_0 = arith.constant 0 : index
    %0 = vector.load %arg1[%c0, %c0_0] : memref<32x32xf32, #tpu.memory_space<vmem>>, vector<32x32xf32>
    %1 = arith.truncf %0 : vector<32x32xf32> to vector<32x32xbf16>
    %c0_1 = arith.constant 0 : index
    %c0_2 = arith.constant 0 : index
    %2 = vector.load %arg2[%c0_1, %c0_2] : memref<32x128xbf16, #tpu.memory_space<vmem>>, vector<32x128xbf16>
    %cst = arith.constant dense<0.000000e+00> : vector<32x128xf32>
    %3 = tpu.matmul %1, %2, %cst {dimension_numbers = #tpu.dot_dimension_numbers<[1], [0], [0], [1], [0, 0, 1, 1], [], []>} : vector<32x32xbf16>, vector<32x128xbf16>, vector<32x128xf32> -> vector<32x128xf32>
    %c0_3 = arith.constant 0 : index
    %c0_4 = arith.constant 0 : index
    %4 = vector.load %arg3[%c0_3, %c0_4] : memref<1x128xf32, #tpu.memory_space<vmem>>, vector<1x128xf32>
    %5 = vector.broadcast %4 : vector<1x128xf32> to vector<32x128xf32>
    %6 = arith.addf %3, %5 : vector<32x128xf32>
    %cst_5 = arith.constant 0.000000e+00 : f32
    %7 = vector.broadcast %cst_5 : f32 to vector<32x128xf32>
    %8 = arith.maximumf %6, %7 : vector<32x128xf32>
    %9 = arith.truncf %8 : vector<32x128xf32> to vector<32x128xbf16>
    %c0_6 = arith.constant 0 : index
    %c0_7 = arith.constant 0 : index
    %10 = vector.load %arg4[%c0_6, %c0_7] : memref<128x128xbf16, #tpu.memory_space<vmem>>, vector<128x128xbf16>
    %cst_8 = arith.constant dense<0.000000e+00> : vector<32x128xf32>
    %11 = tpu.matmul %9, %10, %cst_8 {dimension_numbers = #tpu.dot_dimension_numbers<[1], [0], [0], [1], [0, 0, 1, 1], [], []>} : vector<32x128xbf16>, vector<128x128xbf16>, vector<32x128xf32> -> vector<32x128xf32>
    %c0_9 = arith.constant 0 : index
    %c0_10 = arith.constant 0 : index
    %12 = vector.load %arg5[%c0_9, %c0_10] : memref<1x128xf32, #tpu.memory_space<vmem>>, vector<1x128xf32>
    %13 = vector.broadcast %12 : vector<1x128xf32> to vector<32x128xf32>
    %14 = arith.addf %11, %13 : vector<32x128xf32>
    %cst_11 = arith.constant 0.000000e+00 : f32
    %15 = vector.broadcast %cst_11 : f32 to vector<32x128xf32>
    %16 = arith.maximumf %14, %15 : vector<32x128xf32>
    %17 = arith.truncf %16 : vector<32x128xf32> to vector<32x128xbf16>
    %c0_12 = arith.constant 0 : index
    %c0_13 = arith.constant 0 : index
    %18 = vector.load %arg6[%c0_12, %c0_13] : memref<128x128xbf16, #tpu.memory_space<vmem>>, vector<128x128xbf16>
    %cst_14 = arith.constant dense<0.000000e+00> : vector<32x128xf32>
    %19 = tpu.matmul %17, %18, %cst_14 {dimension_numbers = #tpu.dot_dimension_numbers<[1], [0], [0], [1], [0, 0, 1, 1], [], []>} : vector<32x128xbf16>, vector<128x128xbf16>, vector<32x128xf32> -> vector<32x128xf32>
    %c0_15 = arith.constant 0 : index
    %c0_16 = arith.constant 0 : index
    %20 = vector.load %arg7[%c0_15, %c0_16] : memref<1x128xf32, #tpu.memory_space<vmem>>, vector<1x128xf32>
    %21 = vector.broadcast %20 : vector<1x128xf32> to vector<32x128xf32>
    %22 = arith.addf %19, %21 : vector<32x128xf32>
    %23 = arith.negf %22 : vector<32x128xf32>
    %24 = math.exp %23 : vector<32x128xf32>
    %cst_17 = arith.constant 1.000000e+00 : f32
    %25 = vector.broadcast %cst_17 : f32 to vector<32x128xf32>
    %26 = arith.addf %25, %24 : vector<32x128xf32>
    %27 = arith.divf %25, %26 : vector<32x128xf32>
    %c0_18 = arith.constant 0 : index
    %c0_19 = arith.constant 0 : index
    %28 = vector.load %arg8[%c0_18, %c0_19] : memref<32x128xf32, #tpu.memory_space<vmem>>, vector<32x128xf32>
    tpu.vector_store %arg8[%c0_18, %c0_19], %27 {strides = array<i32>} : memref<32x128xf32, #tpu.memory_space<vmem>>, vector<32x128xf32>,
    return
  }
  func.func @transform_0(%arg0: i32) -> (i32, i32) {
    %c0_i32 = arith.constant 0 : i32
    %c0_i32_0 = arith.constant 0 : i32
    return %arg0, %c0_i32 : i32, i32
  }
  func.func @transform_1(%arg0: i32) -> (i32, i32) {
    %c0_i32 = arith.constant 0 : i32
    %c0_i32_0 = arith.constant 0 : i32
    %c0_i32_1 = arith.constant 0 : i32
    return %c0_i32, %c0_i32_0 : i32, i32
  }
  func.func @transform_2(%arg0: i32) -> (i32, i32) {
    %c0_i32 = arith.constant 0 : i32
    %c0_i32_0 = arith.constant 0 : i32
    %c0_i32_1 = arith.constant 0 : i32
    return %c0_i32, %c0_i32_0 : i32, i32
  }
  func.func @transform_3(%arg0: i32) -> (i32, i32) {
    %c0_i32 = arith.constant 0 : i32
    %c0_i32_0 = arith.constant 0 : i32
    %c0_i32_1 = arith.constant 0 : i32
    return %c0_i32, %c0_i32_0 : i32, i32
  }
  func.func @transform_4(%arg0: i32) -> (i32, i32) {
    %c0_i32 = arith.constant 0 : i32
    %c0_i32_0 = arith.constant 0 : i32
    %c0_i32_1 = arith.constant 0 : i32
    return %c0_i32, %c0_i32_0 : i32, i32
  }
  func.func @transform_5(%arg0: i32) -> (i32, i32) {
    %c0_i32 = arith.constant 0 : i32
    %c0_i32_0 = arith.constant 0 : i32
    %c0_i32_1 = arith.constant 0 : i32
    return %c0_i32, %c0_i32_0 : i32, i32
  }
  func.func @transform_6(%arg0: i32) -> (i32, i32) {
    %c0_i32 = arith.constant 0 : i32
    %c0_i32_0 = arith.constant 0 : i32
    %c0_i32_1 = arith.constant 0 : i32
    return %c0_i32, %c0_i32_0 : i32, i32
  }
  func.func @transform_7(%arg0: i32) -> (i32, i32) {
    %c0_i32 = arith.constant 0 : i32
    %c0_i32_0 = arith.constant 0 : i32
    return %arg0, %c0_i32 : i32, i32
  }
}

</mosaic_0001>

<llo_original>
// kernel: simple_mlp_forward.1
$region0: #{simple_mlp_forward.1}
  #allocation0 [shape = 'u32[]', space=smem, size = 0x4, offset = 0x4, fixed_abs, tag = 'smem constant byte address 0x4 - core index']
  #allocation1 [shape = 'u32[144,128]{1,0:T(1,128)}', space=vmem, size = 0x12000, scoped, tag = 'internal scratch']
  %s0 = inlined_call_operand.hbm [shape: f32[64,32], index: 0, kind: input, shape index: {}]
  %s1 = inlined_call_operand.hbm [shape: bf16[32,128], index: 1, kind: input, shape index: {}]
  %s2 = inlined_call_operand.hbm [shape: f32[1,128], index: 2, kind: input, shape index: {}]
  %s3 = inlined_call_operand.hbm [shape: bf16[128,128], index: 3, kind: input, shape index: {}]
  %s4 = inlined_call_operand.hbm [shape: f32[1,128], index: 4, kind: input, shape index: {}]
  %s5 = inlined_call_operand.hbm [shape: bf16[128,128], index: 5, kind: input, shape index: {}]
  %s6 = inlined_call_operand.hbm [shape: f32[1,128], index: 6, kind: input, shape index: {}]
  %s7 = inlined_call_operand.hbm [shape: f32[64,128], index: 7, kind: output, shape index: {}]
  %s8 = sld [smem:[#allocation0]]
  $region89: #{simple_mlp_forward.1} parent=0
    _
  %s10 = ssub.s32 1, %s8
  %s11 = scalar_select 0, %s10, %s8
  $region1: #{simple_mlp_forward.1} parent=0
    #allocation2 [shape = 'u8[32768]{0}', space=vmem, size = 0x8000, scoped, tag = 'input window, operand 0']
    #allocation3 [shape = 's32[2]{0}', space=sflag, size = 0x8, scoped, tag = 'scoped memory for simple_mlp_forward.1']
    #allocation4 [shape = 's32[2]{0}', space=sflag, size = 0x8, scoped, tag = 'scoped memory for simple_mlp_forward.1']
    #allocation5 [shape = 'u8[8192]{0}', space=vmem, size = 0x2000, scoped, tag = 'input window, operand 1, single buffered']
    #allocation6 [shape = 's32[1]{0}', space=sflag, size = 0x4, scoped, tag = 'scoped memory for simple_mlp_forward.1']
    #allocation7 [shape = 'u8[512]{0}', space=vmem, size = 0x400, scoped, tag = 'input window, operand 2, single buffered']
    #allocation8 [shape = 'u8[32768]{0}', space=vmem, size = 0x8000, scoped, tag = 'input window, operand 3, single buffered']
    #allocation9 [shape = 's32[1]{0}', space=sflag, size = 0x4, scoped, tag = 'scoped memory for simple_mlp_forward.1']
    #allocation10 [shape = 'u8[512]{0}', space=vmem, size = 0x400, scoped, tag = 'input window, operand 4, single buffered']
    #allocation11 [shape = 'u8[32768]{0}', space=vmem, size = 0x8000, scoped, tag = 'input window, operand 5, single buffered']
    #allocation12 [shape = 's32[1]{0}', space=sflag, size = 0x4, scoped, tag = 'scoped memory for simple_mlp_forward.1']
    #allocation13 [shape = 'u8[512]{0}', space=vmem, size = 0x400, scoped, tag = 'input window, operand 6, single buffered']
    #allocation14 [shape = 'u8[32768]{0}', space=vmem, size = 0x8000, scoped, tag = 'output window, operand 0']
    %12 = vsyncpa [#allocation3], 0
    %s13 = scalar_lea.sflag [#allocation3], 1
    %14 = vsyncpa %s13, 0
    %15 = vsyncpa [#allocation6], 0
    %16 = vsyncpa [#allocation9], 0
    %17 = vsyncpa [#allocation12], 0
    %18 = vsyncpa [#allocation4], 0
    %s19 = scalar_lea.sflag [#allocation4], 1
    %20 = vsyncpa %s19, 0
    loop: start=0, step=1, limit=4
    $region2: #{simple_mlp_forward.1} parent=1 // loop_pre_header
      _
    $region3: #{simple_mlp_forward.1} parent=1 // loop_header
      %s22 = sphi 0, %s26
      %p23 = scmp.ge.s32.totalorder %s22, 4
      %s32 = sphi 0, %s34
      %s35 = sphi 0, %s32
      %s36 = sphi 0, %s35
      %s52 = sphi 0, %s36
      %s56 = sphi 0, %s56
      %s58 = sphi 0, %s56
      %s59 = sphi 0, %s58
      %s73 = sphi 0, %s59
      %s77 = sphi 0, %s77
      %s79 = sphi 0, %s77
      %s80 = sphi 0, %s79
      %s94 = sphi 0, %s80
      %s98 = sphi 0, %s98
      %s100 = sphi 0, %s98
      %s101 = sphi 0, %s100
      %s115 = sphi 0, %s101
      %s119 = sphi 0, %s119
      %s121 = sphi 0, %s119
      %s122 = sphi 0, %s121
      %s136 = sphi 0, %s122
      %s140 = sphi 0, %s140
      %s142 = sphi 0, %s140
      %s143 = sphi 0, %s142
      %s157 = sphi 0, %s143
      %s161 = sphi 0, %s161
      %s163 = sphi 0, %s161
      %s164 = sphi 0, %s163
      %s178 = sphi 0, %s164
      %s184 = sphi 0, %s186
      %s187 = sphi 0, %s184
      %s188 = sphi 0, %s187
      %s204 = sphi 0, %s188
    $region4: #{simple_mlp_forward.1} parent=1 // loop_header_branch
      %25 = sbr.rel (%p23) target = $region8
    $region5: #{simple_mlp_forward.1} parent=1 // loop_body
      %s27 = ssub.s32 %s22, 1
      %s28 = ssub.s32 %s22, 2
      %s29 = sadd.s32 %s22, 1
      %s30 = ssub.s32 %s22, %s29
      %p31 = scmp.eq.s32.totalorder %s30, 0
      %s33 = sadd.s32 %s32, 1
      %s34 = scalar_select %p31, %s32, %s33
      %p37 = pneg %p31
      %p38 = scmp.eq.s32.totalorder %s22, 1
      %p39 = por %p37, %p38
      %p40 = scmp.ne.s32.totalorder %s32, %s35
      %p41 = scmp.eq.s32.totalorder %s22, 0
      %p42 = por %p40, %p41
      %p43 = scmp.ne.s32.totalorder %s32, %s35
      %p44 = scmp.eq.s32.totalorder %s27, 1
      %p45 = por %p43, %p44
      %p46 = scmp.ne.s32.totalorder %s35, %s36
      %p47 = scmp.eq.s32.totalorder %s27, 0
      %p48 = por %p46, %p47
      %p49 = scmp.ne.s32.totalorder %s35, %s36
      %p50 = scmp.eq.s32.totalorder %s28, 1
      %p51 = por %p49, %p50
      %p53 = scmp.ne.s32.totalorder %s36, %s52
      %p54 = scmp.eq.s32.totalorder %s28, 0
      %p55 = por %p53, %p54
      %s57 = sadd.s32 %s56, 1
      %p60 = scmp.eq.s32.totalorder %s22, 1
      %p61 = scmp.ne.s32.totalorder %s56, %s58
      %p62 = scmp.eq.s32.totalorder %s22, 0
      %p63 = por %p61, %p62
      %p64 = scmp.ne.s32.totalorder %s56, %s58
      %p65 = scmp.eq.s32.totalorder %s27, 1
      %p66 = por %p64, %p65
      %p67 = scmp.ne.s32.totalorder %s58, %s59
      %p68 = scmp.eq.s32.totalorder %s27, 0
      %p69 = por %p67, %p68
      %p70 = scmp.ne.s32.totalorder %s58, %s59
      %p71 = scmp.eq.s32.totalorder %s28, 1
      %p72 = por %p70, %p71
      %p74 = scmp.ne.s32.totalorder %s59, %s73
      %p75 = scmp.eq.s32.totalorder %s28, 0
      %p76 = por %p74, %p75
      %s78 = sadd.s32 %s77, 1
      %p81 = scmp.eq.s32.totalorder %s22, 1
      %p82 = scmp.ne.s32.totalorder %s77, %s79
      %p83 = scmp.eq.s32.totalorder %s22, 0
      %p84 = por %p82, %p83
      %p85 = scmp.ne.s32.totalorder %s77, %s79
      %p86 = scmp.eq.s32.totalorder %s27, 1
      %p87 = por %p85, %p86
      %p88 = scmp.ne.s32.totalorder %s79, %s80
      %p89 = scmp.eq.s32.totalorder %s27, 0
      %p90 = por %p88, %p89
      %p91 = scmp.ne.s32.totalorder %s79, %s80
      %p92 = scmp.eq.s32.totalorder %s28, 1
      %p93 = por %p91, %p92
      %p95 = scmp.ne.s32.totalorder %s80, %s94
      %p96 = scmp.eq.s32.totalorder %s28, 0
      %p97 = por %p95, %p96
      %s99 = sadd.s32 %s98, 1
      %p102 = scmp.eq.s32.totalorder %s22, 1
      %p103 = scmp.ne.s32.totalorder %s98, %s100
      %p104 = scmp.eq.s32.totalorder %s22, 0
      %p105 = por %p103, %p104
      %p106 = scmp.ne.s32.totalorder %s98, %s100
      %p107 = scmp.eq.s32.totalorder %s27, 1
      %p108 = por %p106, %p107
      %p109 = scmp.ne.s32.totalorder %s100, %s101
      %p110 = scmp.eq.s32.totalorder %s27, 0
      %p111 = por %p109, %p110
      %p112 = scmp.ne.s32.totalorder %s100, %s101
      %p113 = scmp.eq.s32.totalorder %s28, 1
      %p114 = por %p112, %p113
      %p116 = scmp.ne.s32.totalorder %s101, %s115
      %p117 = scmp.eq.s32.totalorder %s28, 0
      %p118 = por %p116, %p117
      %s120 = sadd.s32 %s119, 1
      %p123 = scmp.eq.s32.totalorder %s22, 1
      %p124 = scmp.ne.s32.totalorder %s119, %s121
      %p125 = scmp.eq.s32.totalorder %s22, 0
      %p126 = por %p124, %p125
      %p127 = scmp.ne.s32.totalorder %s119, %s121
      %p128 = scmp.eq.s32.totalorder %s27, 1
      %p129 = por %p127, %p128
      %p130 = scmp.ne.s32.totalorder %s121, %s122
      %p131 = scmp.eq.s32.totalorder %s27, 0
      %p132 = por %p130, %p131
      %p133 = scmp.ne.s32.totalorder %s121, %s122
      %p134 = scmp.eq.s32.totalorder %s28, 1
      %p135 = por %p133, %p134
      %p137 = scmp.ne.s32.totalorder %s122, %s136
      %p138 = scmp.eq.s32.totalorder %s28, 0
      %p139 = por %p137, %p138
      %s141 = sadd.s32 %s140, 1
      %p144 = scmp.eq.s32.totalorder %s22, 1
      %p145 = scmp.ne.s32.totalorder %s140, %s142
      %p146 = scmp.eq.s32.totalorder %s22, 0
      %p147 = por %p145, %p146
      %p148 = scmp.ne.s32.totalorder %s140, %s142
      %p149 = scmp.eq.s32.totalorder %s27, 1
      %p150 = por %p148, %p149
      %p151 = scmp.ne.s32.totalorder %s142, %s143
      %p152 = scmp.eq.s32.totalorder %s27, 0
      %p153 = por %p151, %p152
      %p154 = scmp.ne.s32.totalorder %s142, %s143
      %p155 = scmp.eq.s32.totalorder %s28, 1
      %p156 = por %p154, %p155
      %p158 = scmp.ne.s32.totalorder %s143, %s157
      %p159 = scmp.eq.s32.totalorder %s28, 0
      %p160 = por %p158, %p159
      %s162 = sadd.s32 %s161, 1
      %p165 = scmp.eq.s32.totalorder %s22, 1
      %p166 = scmp.ne.s32.totalorder %s161, %s163
      %p167 = scmp.eq.s32.totalorder %s22, 0
      %p168 = por %p166, %p167
      %p169 = scmp.ne.s32.totalorder %s161, %s163
      %p170 = scmp.eq.s32.totalorder %s27, 1
      %p171 = por %p169, %p170
      %p172 = scmp.ne.s32.totalorder %s163, %s164
      %p173 = scmp.eq.s32.totalorder %s27, 0
      %p174 = por %p172, %p173
      %p175 = scmp.ne.s32.totalorder %s163, %s164
      %p176 = scmp.eq.s32.totalorder %s28, 1
      %p177 = por %p175, %p176
      %p179 = scmp.ne.s32.totalorder %s164, %s178
      %p180 = scmp.eq.s32.totalorder %s28, 0
      %p181 = por %p179, %p180
      %s182 = ssub.s32 %s22, %s29
      %p183 = scmp.eq.s32.totalorder %s182, 0
      %s185 = sadd.s32 %s184, 1
      %s186 = scalar_select %p183, %s184, %s185
      %p189 = pneg %p183
      %p190 = scmp.eq.s32.totalorder %s22, 1
      %p191 = por %p189, %p190
      %p192 = scmp.ne.s32.totalorder %s184, %s187
      %p193 = scmp.eq.s32.totalorder %s22, 0
      %p194 = por %p192, %p193
      %p195 = scmp.ne.s32.totalorder %s184, %s187
      %p196 = scmp.eq.s32.totalorder %s27, 1
      %p197 = por %p195, %p196
      %p198 = scmp.ne.s32.totalorder %s187, %s188
      %p199 = scmp.eq.s32.totalorder %s27, 0
      %p200 = por %p198, %p199
      %p201 = scmp.ne.s32.totalorder %s187, %s188
      %p202 = scmp.eq.s32.totalorder %s28, 1
      %p203 = por %p201, %p202
      %p205 = scmp.ne.s32.totalorder %s188, %s204
      %p206 = scmp.eq.s32.totalorder %s28, 0
      %p207 = por %p205, %p206
      %p208 = scmp.le.s32.totalorder 1, %s22
      %p209 = scmp.lt.s32.totalorder %s22, 3
      %p210 = pnand %p208, %p209
      %p211 = pneg %p210
      // Predicated region
      $region9: #{simple_mlp_forward.1} parent=5 // pred_check
        _
      $region10: #{simple_mlp_forward.1} parent=5 // pred_check_branch
        %213 = sbr.rel (%p210) target = $region12
      $region11: #{simple_mlp_forward.1} parent=5 // pred_region
        %s214 = ssub.s32 %s22, 1
        // Predicated region
        $region13: #{simple_mlp_forward.1} parent=11 // pred_check
          %p215 = pneg %p69
        $region14: #{simple_mlp_forward.1} parent=11 // pred_check_branch
          %217 = sbr.rel (%p215) target = $region16
        $region15: #{simple_mlp_forward.1} parent=11 // pred_region
          %s219 = ssub.s32 256, 256
          %220 = vsyncadd [#allocation6], %s219
          %s221 = sshll.u32 [#allocation5], 4
          %s222 = int_to_ptr.vmem [resolvable:$true] %s221
          %227 = dma.hbm_to_vmem [thread:$0]  %s1, 256, %s222, [#allocation6], 64, 64, 4
        $region16: #{simple_mlp_forward.1} parent=11 // pred_fallthru
          _
        // Predicated region
        $region17: #{simple_mlp_forward.1} parent=11 // pred_check
          %p228 = pneg %p90
        $region18: #{simple_mlp_forward.1} parent=11 // pred_check_branch
          %230 = sbr.rel (%p228) target = $region20
        $region19: #{simple_mlp_forward.1} parent=11 // pred_region
          %s232 = ssub.s32 16, 16
          %233 = vsyncadd [#allocation6], %s232
          %s235 = sshll.u32 [#allocation7], 4
          %s236 = int_to_ptr.vmem [resolvable:$true] %s235
          %238 = dma.hbm_to_vmem [thread:$0]  %s2, 16, %s236, [#allocation6]
        $region20: #{simple_mlp_forward.1} parent=11 // pred_fallthru
          _
        // Predicated region
        $region21: #{simple_mlp_forward.1} parent=11 // pred_check
          %p239 = pneg %p111
        $region22: #{simple_mlp_forward.1} parent=11 // pred_check_branch
          %241 = sbr.rel (%p239) target = $region24
        $region23: #{simple_mlp_forward.1} parent=11 // pred_region
          %s243 = ssub.s32 1024, 1024
          %244 = vsyncadd [#allocation9], %s243
          %s245 = sshll.u32 [#allocation8], 4
          %s246 = int_to_ptr.vmem [resolvable:$true] %s245
          %251 = dma.hbm_to_vmem [thread:$0]  %s3, 1024, %s246, [#allocation9], 64, 64, 4
        $region24: #{simple_mlp_forward.1} parent=11 // pred_fallthru
          _
        // Predicated region
        $region25: #{simple_mlp_forward.1} parent=11 // pred_check
          %p252 = pneg %p132
        $region26: #{simple_mlp_forward.1} parent=11 // pred_check_branch
          %254 = sbr.rel (%p252) target = $region28
        $region27: #{simple_mlp_forward.1} parent=11 // pred_region
          %s256 = ssub.s32 16, 16
          %257 = vsyncadd [#allocation9], %s256
          %s259 = sshll.u32 [#allocation10], 4
          %s260 = int_to_ptr.vmem [resolvable:$true] %s259
          %262 = dma.hbm_to_vmem [thread:$0]  %s4, 16, %s260, [#allocation9]
        $region28: #{simple_mlp_forward.1} parent=11 // pred_fallthru
          _
        // Predicated region
        $region29: #{simple_mlp_forward.1} parent=11 // pred_check
          %p263 = pneg %p153
        $region30: #{simple_mlp_forward.1} parent=11 // pred_check_branch
          %265 = sbr.rel (%p263) target = $region32
        $region31: #{simple_mlp_forward.1} parent=11 // pred_region
          %s267 = ssub.s32 1024, 1024
          %268 = vsyncadd [#allocation12], %s267
          %s269 = sshll.u32 [#allocation11], 4
          %s270 = int_to_ptr.vmem [resolvable:$true] %s269
          %275 = dma.hbm_to_vmem [thread:$0]  %s5, 1024, %s270, [#allocation12], 64, 64, 4
        $region32: #{simple_mlp_forward.1} parent=11 // pred_fallthru
          _
        // Predicated region
        $region33: #{simple_mlp_forward.1} parent=11 // pred_check
          %p276 = pneg %p174
        $region34: #{simple_mlp_forward.1} parent=11 // pred_check_branch
          %278 = sbr.rel (%p276) target = $region36
        $region35: #{simple_mlp_forward.1} parent=11 // pred_region
          %s280 = ssub.s32 16, 16
          %281 = vsyncadd [#allocation12], %s280
          %s283 = sshll.u32 [#allocation13], 4
          %s284 = int_to_ptr.vmem [resolvable:$true] %s283
          %286 = dma.hbm_to_vmem [thread:$0]  %s6, 16, %s284, [#allocation12]
        $region36: #{simple_mlp_forward.1} parent=11 // pred_fallthru
          _
      $region12: #{simple_mlp_forward.1} parent=5 // pred_fallthru
        _
      %p287 = scmp.lt.s32.totalorder %s22, 2
      // Predicated region
      $region37: #{simple_mlp_forward.1} parent=5 // pred_check
        %p288 = pneg %p287
      $region38: #{simple_mlp_forward.1} parent=5 // pred_check_branch
        %290 = sbr.rel (%p288) target = $region40
      $region39: #{simple_mlp_forward.1} parent=5 // pred_region
        // Predicated region
        $region41: #{simple_mlp_forward.1} parent=39 // pred_check
          %p291 = pneg %p42
        $region42: #{simple_mlp_forward.1} parent=39 // pred_check_branch
          %293 = sbr.rel (%p291) target = $region44
        $region43: #{simple_mlp_forward.1} parent=39 // pred_region
          %s294 = sand.u32 %s32, 1
          %s295 = scalar_lea.sflag [#allocation3], %s294
          %s296 = sand.u32 %s32, 1
          %s297 = smul.addr %s296, 32
          %s298 = scalar_lea.vmem [#allocation2], %s297
          %s299 = smul.u32 4, %s22
          %s301 = ssub.s32 512, 512
          %302 = vsyncadd %s295, %s301
          %s303 = smul.addr %s299, 128
          %s304 = scalar_lea.hbm %s0, %s303
          %s305 = sshll.u32 %s298, 4
          %s306 = int_to_ptr.vmem [resolvable:$true] %s305
          %311 = dma.hbm_to_vmem [thread:$0]  %s304, 512, %s306, %s295, 128, 128, 8
        $region44: #{simple_mlp_forward.1} parent=39 // pred_fallthru
          _
      $region40: #{simple_mlp_forward.1} parent=5 // pred_fallthru
        _
      %p312 = scmp.le.s32.totalorder 1, %s22
      %p313 = scmp.lt.s32.totalorder %s22, 3
      %p314 = pnand %p312, %p313
      %p315 = pneg %p314
      // Predicated region
      $region45: #{simple_mlp_forward.1} parent=5 // pred_check
        _
      $region46: #{simple_mlp_forward.1} parent=5 // pred_check_branch
        %317 = sbr.rel (%p314) target = $region48
      $region47: #{simple_mlp_forward.1} parent=5 // pred_region
        %s318 = ssub.s32 %s22, 1
        %s319 = sand.u32 %s35, 1
        %s320 = scalar_lea.sflag [#allocation3], %s319
        %s321 = sand.u32 %s35, 1
        %s322 = smul.addr %s321, 32
        %s323 = scalar_lea.vmem [#allocation2], %s322
        // Predicated region
        $region49: #{simple_mlp_forward.1} parent=47 // pred_check
          %p324 = pneg %p48
        $region50: #{simple_mlp_forward.1} parent=47 // pred_check_branch
          %326 = sbr.rel (%p324) target = $region52
        $region51: #{simple_mlp_forward.1} parent=47 // pred_region
          %327 = dma.done %s320, 512
        $region52: #{simple_mlp_forward.1} parent=47 // pred_fallthru
          _
        // Predicated region
        $region53: #{simple_mlp_forward.1} parent=47 // pred_check
          %p328 = pneg %p69
        $region54: #{simple_mlp_forward.1} parent=47 // pred_check_branch
          %330 = sbr.rel (%p328) target = $region56
        $region55: #{simple_mlp_forward.1} parent=47 // pred_region
          %331 = dma.done [#allocation6], 256
        $region56: #{simple_mlp_forward.1} parent=47 // pred_fallthru
          _
        // Predicated region
        $region57: #{simple_mlp_forward.1} parent=47 // pred_check
          %p332 = pneg %p90
        $region58: #{simple_mlp_forward.1} parent=47 // pred_check_branch
          %334 = sbr.rel (%p332) target = $region60
        $region59: #{simple_mlp_forward.1} parent=47 // pred_region
          %335 = dma.done [#allocation6], 16
        $region60: #{simple_mlp_forward.1} parent=47 // pred_fallthru
          _
        // Predicated region
        $region61: #{simple_mlp_forward.1} parent=47 // pred_check
          %p336 = pneg %p111
        $region62: #{simple_mlp_forward.1} parent=47 // pred_check_branch
          %338 = sbr.rel (%p336) target = $region64
        $region63: #{simple_mlp_forward.1} parent=47 // pred_region
          %339 = dma.done [#allocation9], 1024
        $region64: #{simple_mlp_forward.1} parent=47 // pred_fallthru
          _
        // Predicated region
        $region65: #{simple_mlp_forward.1} parent=47 // pred_check
          %p340 = pneg %p132
        $region66: #{simple_mlp_forward.1} parent=47 // pred_check_branch
          %342 = sbr.rel (%p340) target = $region68
        $region67: #{simple_mlp_forward.1} parent=47 // pred_region
          %343 = dma.done [#allocation9], 16
        $region68: #{simple_mlp_forward.1} parent=47 // pred_fallthru
          _
        // Predicated region
        $region69: #{simple_mlp_forward.1} parent=47 // pred_check
          %p344 = pneg %p153
        $region70: #{simple_mlp_forward.1} parent=47 // pred_check_branch
          %346 = sbr.rel (%p344) target = $region72
        $region71: #{simple_mlp_forward.1} parent=47 // pred_region
          %347 = dma.done [#allocation12], 1024
        $region72: #{simple_mlp_forward.1} parent=47 // pred_fallthru
          _
        // Predicated region
        $region73: #{simple_mlp_forward.1} parent=47 // pred_check
          %p348 = pneg %p174
        $region74: #{simple_mlp_forward.1} parent=47 // pred_check_branch
          %350 = sbr.rel (%p348) target = $region76
        $region75: #{simple_mlp_forward.1} parent=47 // pred_region
          %351 = dma.done [#allocation12], 16
        $region76: #{simple_mlp_forward.1} parent=47 // pred_fallthru
          _
        %s352 = sand.u32 %s35, 1
        %s353 = scalar_lea.sflag [#allocation3], %s352
        %s354 = sand.u32 %s35, 1
        %s355 = smul.addr %s354, 32
        %s356 = scalar_lea.vmem [#allocation2], %s355
        %p357 = pneg %p48
        %p358 = pneg %p45
        %p359 = pneg %p69
        %p360 = pneg %p66
        %p361 = pneg %p90
        %p362 = pneg %p87
        %p363 = pneg %p111
        %p364 = pneg %p108
        %p365 = pneg %p132
        %p366 = pneg %p129
        %p367 = pneg %p153
        %p368 = pneg %p150
        %p369 = pneg %p174
        %p370 = pneg %p171
        %p371 = pneg %p200
        %p372 = pneg %p197
        %s373 = sand.u32 %s187, 1
        %s374 = scalar_lea.sflag [#allocation4], %s373
        %s375 = sand.u32 %s187, 1
        %s376 = smul.addr %s375, 32
        %s377 = scalar_lea.vmem [#allocation14], %s376
        %s378 = smul.u32 4, %s27
        %s379 = smul.u32 4, %s27
        %v381 = vld [vmem:[%s323] sm:$0xff]
        %v382 = vld [vmem:[%s323 + $0x8] sm:$0xff]
        %v383 = vld [vmem:[%s323 + $0x10] sm:$0xff]
        %v384 = vld [vmem:[%s323 + $0x18] sm:$0xff]
        %v385 = vpack.c.bf16 %v382, %v381
        %v386 = vpack.c.bf16 %v384, %v383
        %v387 = vld [vmem:[#allocation5] sm:$0xf]
        %v388 = vld [vmem:[#allocation5 + $0x4] sm:$0xf]
        %v389 = vld [vmem:[#allocation5 + $0x8] sm:$0xf]
        %v390 = vld [vmem:[#allocation5 + $0xc] sm:$0xf]
        %v391 = vld [vmem:[#allocation7] sm:$0x1]
        %v393 = vlaneseq
        %v394 = vshrl.u32 %v393, 7
        %v395 = vsub.s32 0, %v394
        %v396 = vrot.slane %v391, %v395
        %v402 = vunpack.c.l.b16 %v387
        %v403 = vunpack.c.l.b16 %v388
        %v404 = vunpack.c.l.b16 %v389
        %v405 = vunpack.c.l.b16 %v390
        %v406 = vpack.c.b16 %v403, %v402
        %v407 = vpack.c.b16 %v405, %v404
        %vm410 = vcmask 261120
        %v412 = vsel %vm410, %v385, 0
        %v415 = vsel %vm410, %v386, 0
        %417 = vmatprep.subr.bf16.mxu0 0
        %418 = vmatpush1.bf16.msra.mxu0 %v406
        %419 = vmatprep.subr.bf16.mxu0 0
        %420 = vmatpush1.bf16.msra.mxu0 %v407
        %421 = vmatprep.subr.bf16.mxu0 0
        %422 = vmatpush1.bf16.msra.mxu0 0
        %423 = vmatprep.subr.bf16.mxu0 0
        %424 = vmatpush1.bf16.msra.mxu0 0
        %425 = vmatprep.subr.bf16.mxu0 0
        %426 = vmatpush1.bf16.msra.mxu0 0
        %427 = vmatprep.subr.bf16.mxu0 0
        %428 = vmatpush1.bf16.msra.mxu0 0
        %429 = vmatprep.subr.bf16.mxu0 0
        %430 = vmatpush1.bf16.msra.mxu0 0
        %431 = vmatprep.subr.bf16.mxu0 0
        %432 = vmatpush1.bf16.msra.mxu0 0
        %433 = vmatprep.subr.bf16.mxu0 0
        %434 = vmatpush1.bf16.msra.mxu0 0
        %435 = vmatprep.subr.bf16.mxu0 0
        %436 = vmatpush1.bf16.msra.mxu0 0
        %437 = vmatprep.subr.bf16.mxu0 0
        %438 = vmatpush1.bf16.msra.mxu0 0
        %439 = vmatprep.subr.bf16.mxu0 0
        %440 = vmatpush1.bf16.msra.mxu0 0
        %441 = vmatprep.subr.bf16.mxu0 0
        %442 = vmatpush1.bf16.msra.mxu0 0
        %443 = vmatprep.subr.bf16.mxu0 0
        %444 = vmatpush1.bf16.msra.mxu0 0
        %445 = vmatprep.subr.bf16.mxu0 0
        %446 = vmatpush1.bf16.msra.mxu0 0
        %447 = vmatprep.subr.bf16.mxu0 0
        %448 = vmatpush1.bf16.msra.mxu0 0
        %449 = vmatprep.mubr.bf16.mxu0 0
        %450 = vmatmul.mubr.bf16.gmra.mrb[0].mxu0 %v412
        %v451 = vpop.f32.mrb[0].mxu0
        %v452 = vadd.f32 %v396, %v451
        %v453 = vpop.f32.mrb[0].mxu0
        %v454 = vpop.f32.mrb[0].mxu0
        %v455 = vadd.f32 %v396, %v454
        %v456 = vpop.f32.mrb[0].mxu0
        %457 = vmatprep.mubr.bf16.mxu0 0
        %458 = vmatmul.mubr.bf16.gmra.mrb[0].mxu0 %v415
        %v459 = vpop.f32.mrb[0].mxu0
        %v460 = vadd.f32 %v396, %v459
        %v461 = vpop.f32.mrb[0].mxu0
        %v462 = vpop.f32.mrb[0].mxu0
        %v463 = vadd.f32 %v396, %v462
        %v464 = vpop.f32.mrb[0].mxu0
        %465 = vdwg.mxu0
        %v466 = vmax.f32 %v452, 0.0
        %v467 = vmax.f32 %v455, 0.0
        %v468 = vmax.f32 %v460, 0.0
        %v469 = vmax.f32 %v463, 0.0
        %v470 = vpack.c.bf16 %v467, %v466
        %v471 = vpack.c.bf16 %v469, %v468
        %v472 = vld [vmem:[#allocation8] sm:$0xf]
        %v473 = vld [vmem:[#allocation8 + $0x4] sm:$0xf]
        %v474 = vld [vmem:[#allocation8 + $0x8] sm:$0xf]
        %v475 = vld [vmem:[#allocation8 + $0xc] sm:$0xf]
        %v476 = vld [vmem:[#allocation8 + $0x10] sm:$0xf]
        %v477 = vld [vmem:[#allocation8 + $0x14] sm:$0xf]
        %v478 = vld [vmem:[#allocation8 + $0x18] sm:$0xf]
        %v479 = vld [vmem:[#allocation8 + $0x1c] sm:$0xf]
        %v480 = vld [vmem:[#allocation8 + $0x20] sm:$0xf]
        %v481 = vld [vmem:[#allocation8 + $0x24] sm:$0xf]
        %v482 = vld [vmem:[#allocation8 + $0x28] sm:$0xf]
        %v483 = vld [vmem:[#allocation8 + $0x2c] sm:$0xf]
        %v484 = vld [vmem:[#allocation8 + $0x30] sm:$0xf]
        %v485 = vld [vmem:[#allocation8 + $0x34] sm:$0xf]
        %v486 = vld [vmem:[#allocation8 + $0x38] sm:$0xf]
        %v487 = vld [vmem:[#allocation8 + $0x3c] sm:$0xf]
        %v488 = vld [vmem:[#allocation10] sm:$0x1]
        %v490 = vlaneseq
        %v491 = vshrl.u32 %v490, 7
        %v492 = vsub.s32 0, %v491
        %v493 = vrot.slane %v488, %v492
        %v511 = vunpack.c.l.b16 %v472
        %v512 = vunpack.c.l.b16 %v473
        %v513 = vunpack.c.l.b16 %v474
        %v514 = vunpack.c.l.b16 %v475
        %v515 = vunpack.c.l.b16 %v476
        %v516 = vunpack.c.l.b16 %v477
        %v517 = vunpack.c.l.b16 %v478
        %v518 = vunpack.c.l.b16 %v479
        %v519 = vunpack.c.l.b16 %v480
        %v520 = vunpack.c.l.b16 %v481
        %v521 = vunpack.c.l.b16 %v482
        %v522 = vunpack.c.l.b16 %v483
        %v523 = vunpack.c.l.b16 %v484
        %v524 = vunpack.c.l.b16 %v485
        %v525 = vunpack.c.l.b16 %v486
        %v526 = vunpack.c.l.b16 %v487
        %v527 = vpack.c.b16 %v512, %v511
        %v528 = vpack.c.b16 %v514, %v513
        %v529 = vpack.c.b16 %v516, %v515
        %v530 = vpack.c.b16 %v518, %v517
        %v531 = vpack.c.b16 %v520, %v519
        %v532 = vpack.c.b16 %v522, %v521
        %v533 = vpack.c.b16 %v524, %v523
        %v534 = vpack.c.b16 %v526, %v525
        %543 = vmatprep.subr.bf16.mxu0 0
        %544 = vmatpush1.bf16.msra.mxu0 %v527
        %545 = vmatprep.subr.bf16.mxu0 0
        %546 = vmatpush1.bf16.msra.mxu0 %v528
        %547 = vmatprep.subr.bf16.mxu0 0
        %548 = vmatpush1.bf16.msra.mxu0 %v529
        %549 = vmatprep.subr.bf16.mxu0 0
        %550 = vmatpush1.bf16.msra.mxu0 %v530
        %551 = vmatprep.subr.bf16.mxu0 0
        %552 = vmatpush1.bf16.msra.mxu0 %v531
        %553 = vmatprep.subr.bf16.mxu0 0
        %554 = vmatpush1.bf16.msra.mxu0 %v532
        %555 = vmatprep.subr.bf16.mxu0 0
        %556 = vmatpush1.bf16.msra.mxu0 %v533
        %557 = vmatprep.subr.bf16.mxu0 0
        %558 = vmatpush1.bf16.msra.mxu0 %v534
        %559 = vmatprep.subr.bf16.mxu0 0
        %560 = vmatpush1.bf16.msra.mxu0 0
        %561 = vmatprep.subr.bf16.mxu0 0
        %562 = vmatpush1.bf16.msra.mxu0 0
        %563 = vmatprep.subr.bf16.mxu0 0
        %564 = vmatpush1.bf16.msra.mxu0 0
        %565 = vmatprep.subr.bf16.mxu0 0
        %566 = vmatpush1.bf16.msra.mxu0 0
        %567 = vmatprep.subr.bf16.mxu0 0
        %568 = vmatpush1.bf16.msra.mxu0 0
        %569 = vmatprep.subr.bf16.mxu0 0
        %570 = vmatpush1.bf16.msra.mxu0 0
        %571 = vmatprep.subr.bf16.mxu0 0
        %572 = vmatpush1.bf16.msra.mxu0 0
        %573 = vmatprep.subr.bf16.mxu0 0
        %574 = vmatpush1.bf16.msra.mxu0 0
        %575 = vmatprep.mubr.bf16.mxu0 0
        %576 = vmatmul.mubr.bf16.gmra.mrb[0].mxu0 %v470
        %v577 = vpop.f32.mrb[0].mxu0
        %v578 = vadd.f32 %v493, %v577
        %v579 = vpop.f32.mrb[0].mxu0
        %v580 = vpop.f32.mrb[0].mxu0
        %v581 = vadd.f32 %v493, %v580
        %v582 = vpop.f32.mrb[0].mxu0
        %583 = vmatprep.mubr.bf16.mxu0 0
        %584 = vmatmul.mubr.bf16.gmra.mrb[0].mxu0 %v471
        %v585 = vpop.f32.mrb[0].mxu0
        %v586 = vadd.f32 %v493, %v585
        %v587 = vpop.f32.mrb[0].mxu0
        %v588 = vpop.f32.mrb[0].mxu0
        %v589 = vadd.f32 %v493, %v588
        %v590 = vpop.f32.mrb[0].mxu0
        %591 = vdwg.mxu0
        %v592 = vmax.f32 %v578, 0.0
        %v593 = vmax.f32 %v581, 0.0
        %v594 = vmax.f32 %v586, 0.0
        %v595 = vmax.f32 %v589, 0.0
        %v596 = vpack.c.bf16 %v593, %v592
        %v597 = vpack.c.bf16 %v595, %v594
        %v598 = vld [vmem:[#allocation11] sm:$0xf]
        %v599 = vld [vmem:[#allocation11 + $0x4] sm:$0xf]
        %v600 = vld [vmem:[#allocation11 + $0x8] sm:$0xf]
        %v601 = vld [vmem:[#allocation11 + $0xc] sm:$0xf]
        %v602 = vld [vmem:[#allocation11 + $0x10] sm:$0xf]
        %v603 = vld [vmem:[#allocation11 + $0x14] sm:$0xf]
        %v604 = vld [vmem:[#allocation11 + $0x18] sm:$0xf]
        %v605 = vld [vmem:[#allocation11 + $0x1c] sm:$0xf]
        %v606 = vld [vmem:[#allocation11 + $0x20] sm:$0xf]
        %v607 = vld [vmem:[#allocation11 + $0x24] sm:$0xf]
        %v608 = vld [vmem:[#allocation11 + $0x28] sm:$0xf]
        %v609 = vld [vmem:[#allocation11 + $0x2c] sm:$0xf]
        %v610 = vld [vmem:[#allocation11 + $0x30] sm:$0xf]
        %v611 = vld [vmem:[#allocation11 + $0x34] sm:$0xf]
        %v612 = vld [vmem:[#allocation11 + $0x38] sm:$0xf]
        %v613 = vld [vmem:[#allocation11 + $0x3c] sm:$0xf]
        %v614 = vld [vmem:[#allocation13] sm:$0x1]
        %v616 = vlaneseq
        %v617 = vshrl.u32 %v616, 7
        %v618 = vsub.s32 0, %v617
        %v619 = vrot.slane %v614, %v618
        %v637 = vunpack.c.l.b16 %v598
        %v638 = vunpack.c.l.b16 %v599
        %v639 = vunpack.c.l.b16 %v600
        %v640 = vunpack.c.l.b16 %v601
        %v641 = vunpack.c.l.b16 %v602
        %v642 = vunpack.c.l.b16 %v603
        %v643 = vunpack.c.l.b16 %v604
        %v644 = vunpack.c.l.b16 %v605
        %v645 = vunpack.c.l.b16 %v606
        %v646 = vunpack.c.l.b16 %v607
        %v647 = vunpack.c.l.b16 %v608
        %v648 = vunpack.c.l.b16 %v609
        %v649 = vunpack.c.l.b16 %v610
        %v650 = vunpack.c.l.b16 %v611
        %v651 = vunpack.c.l.b16 %v612
        %v652 = vunpack.c.l.b16 %v613
        %v653 = vpack.c.b16 %v638, %v637
        %v654 = vpack.c.b16 %v640, %v639
        %v655 = vpack.c.b16 %v642, %v641
        %v656 = vpack.c.b16 %v644, %v643
        %v657 = vpack.c.b16 %v646, %v645
        %v658 = vpack.c.b16 %v648, %v647
        %v659 = vpack.c.b16 %v650, %v649
        %v660 = vpack.c.b16 %v652, %v651
        %669 = vmatprep.subr.bf16.mxu0 0
        %670 = vmatpush1.bf16.msra.mxu0 %v653
        %671 = vmatprep.subr.bf16.mxu0 0
        %672 = vmatpush1.bf16.msra.mxu0 %v654
        %673 = vmatprep.subr.bf16.mxu0 0
        %674 = vmatpush1.bf16.msra.mxu0 %v655
        %675 = vmatprep.subr.bf16.mxu0 0
        %676 = vmatpush1.bf16.msra.mxu0 %v656
        %677 = vmatprep.subr.bf16.mxu0 0
        %678 = vmatpush1.bf16.msra.mxu0 %v657
        %679 = vmatprep.subr.bf16.mxu0 0
        %680 = vmatpush1.bf16.msra.mxu0 %v658
        %681 = vmatprep.subr.bf16.mxu0 0
        %682 = vmatpush1.bf16.msra.mxu0 %v659
        %683 = vmatprep.subr.bf16.mxu0 0
        %684 = vmatpush1.bf16.msra.mxu0 %v660
        %685 = vmatprep.subr.bf16.mxu0 0
        %686 = vmatpush1.bf16.msra.mxu0 0
        %687 = vmatprep.subr.bf16.mxu0 0
        %688 = vmatpush1.bf16.msra.mxu0 0
        %689 = vmatprep.subr.bf16.mxu0 0
        %690 = vmatpush1.bf16.msra.mxu0 0
        %691 = vmatprep.subr.bf16.mxu0 0
        %692 = vmatpush1.bf16.msra.mxu0 0
        %693 = vmatprep.subr.bf16.mxu0 0
        %694 = vmatpush1.bf16.msra.mxu0 0
        %695 = vmatprep.subr.bf16.mxu0 0
        %696 = vmatpush1.bf16.msra.mxu0 0
        %697 = vmatprep.subr.bf16.mxu0 0
        %698 = vmatpush1.bf16.msra.mxu0 0
        %699 = vmatprep.subr.bf16.mxu0 0
        %700 = vmatpush1.bf16.msra.mxu0 0
        %701 = vmatprep.mubr.bf16.mxu0 0
        %702 = vmatmul.mubr.bf16.gmra.mrb[0].mxu0 %v596
        %v703 = vpop.f32.mrb[0].mxu0
        %v704 = vadd.f32 %v619, %v703
        %v705 = vpop.f32.mrb[0].mxu0
        %v706 = vpop.f32.mrb[0].mxu0
        %v707 = vadd.f32 %v619, %v706
        %v708 = vpop.f32.mrb[0].mxu0
        %709 = vmatprep.mubr.bf16.mxu0 0
        %710 = vmatmul.mubr.bf16.gmra.mrb[0].mxu0 %v597
        %v711 = vpop.f32.mrb[0].mxu0
        %v712 = vadd.f32 %v619, %v711
        %v713 = vpop.f32.mrb[0].mxu0
        %v714 = vpop.f32.mrb[0].mxu0
        %v715 = vadd.f32 %v619, %v714
        %v716 = vpop.f32.mrb[0].mxu0
        %717 = vdwg.mxu0
        %v718 = vxor.u32 %v704, 2147483648
        %v719 = vxor.u32 %v707, 2147483648
        %v720 = vxor.u32 %v712, 2147483648
        %v721 = vxor.u32 %v715, 2147483648
        %v722 = vmul.f32 %v718, 1.442695
        %v723 = vpow.pop %v722
        %v724 = vmul.f32 %v719, 1.442695
        %v725 = vpow.pop %v724
        %v726 = vmul.f32 %v720, 1.442695
        %v727 = vpow.pop %v726
        %v728 = vmul.f32 %v721, 1.442695
        %v729 = vpow.pop %v728
        %v730 = vadd.f32 %v723, 1.0
        %v731 = vadd.f32 %v725, 1.0
        %v732 = vadd.f32 %v727, 1.0
        %v733 = vadd.f32 %v729, 1.0
        %v734 = vrcp.pop %v730
        %v735 = vmul.f32 1.0, %v734
        %v736 = vrcp.pop %v731
        %v737 = vmul.f32 1.0, %v736
        %v738 = vrcp.pop %v732
        %v739 = vmul.f32 1.0, %v738
        %v740 = vrcp.pop %v733
        %v741 = vmul.f32 1.0, %v740
        %742 = vst [vmem:[%s377] sm:$0xff] %v735
        %743 = vst [vmem:[%s377 + $0x8] sm:$0xff] %v737
        %744 = vst [vmem:[%s377 + $0x10] sm:$0xff] %v739
        %745 = vst [vmem:[%s377 + $0x18] sm:$0xff] %v741
        %s746 = sand.u32 %s187, 1
        %s747 = scalar_lea.sflag [#allocation4], %s746
        %s748 = sand.u32 %s187, 1
        %s749 = smul.addr %s748, 32
        %s750 = scalar_lea.vmem [#allocation14], %s749
        // Predicated region
        $region77: #{simple_mlp_forward.1} parent=47 // pred_check
          %p751 = pneg %p197
        $region78: #{simple_mlp_forward.1} parent=47 // pred_check_branch
          %753 = sbr.rel (%p751) target = $region80
        $region79: #{simple_mlp_forward.1} parent=47 // pred_region
          %s754 = smul.u32 4, %s27
          %s756 = ssub.s32 512, 512
          %757 = vsyncadd %s747, %s756
          %s758 = smul.addr %s754, 128
          %s759 = scalar_lea.hbm %s7, %s758
          %s760 = sshll.u32 %s750, 4
          %s761 = int_to_ptr.vmem [resolvable:$true] %s760
          %766 = dma.vmem_to_hbm [thread:$0]  %s761, 512, %s759, %s747, 128, 128, 8
        $region80: #{simple_mlp_forward.1} parent=47 // pred_fallthru
          _
      $region48: #{simple_mlp_forward.1} parent=5 // pred_fallthru
        _
      %p767 = scmp.le.s32.totalorder 2, %s22
      // Predicated region
      $region81: #{simple_mlp_forward.1} parent=5 // pred_check
        %p768 = pneg %p767
      $region82: #{simple_mlp_forward.1} parent=5 // pred_check_branch
        %770 = sbr.rel (%p768) target = $region84
      $region83: #{simple_mlp_forward.1} parent=5 // pred_region
        %s771 = ssub.s32 %s22, 2
        // Predicated region
        $region85: #{simple_mlp_forward.1} parent=83 // pred_check
          %p772 = pneg %p203
        $region86: #{simple_mlp_forward.1} parent=83 // pred_check_branch
          %774 = sbr.rel (%p772) target = $region88
        $region87: #{simple_mlp_forward.1} parent=83 // pred_region
          %s775 = sand.u32 %s188, 1
          %s776 = scalar_lea.sflag [#allocation4], %s775
          %s777 = sand.u32 %s188, 1
          %s778 = smul.addr %s777, 32
          %s779 = scalar_lea.vmem [#allocation14], %s778
          %780 = dma.done %s776, 512
        $region88: #{simple_mlp_forward.1} parent=83 // pred_fallthru
          _
      $region84: #{simple_mlp_forward.1} parent=5 // pred_fallthru
        _
    $region6: #{simple_mlp_forward.1} parent=1 // loop_footer
      %s26 = sadd.s32 1, %s22
    $region7: #{simple_mlp_forward.1} parent=1 // loop_footer_branch
      %21 = sbr.rel target = $region3
    $region8: #{simple_mlp_forward.1} parent=1 // loop_exit
      _
    %781 = vsyncpa [#allocation3], 1
    %s782 = scalar_lea.sflag [#allocation3], 1
    %783 = vsyncpa %s782, 1
    %784 = vsyncpa [#allocation6], 1
    %785 = vsyncpa [#allocation9], 1
    %786 = vsyncpa [#allocation12], 1
    %787 = vsyncpa [#allocation4], 1
    %s788 = scalar_lea.sflag [#allocation4], 1
    %789 = vsyncpa %s788, 1

</llo_original>
